<compile_context>
chip_gen: v5e
topology: v5e:2x2
jax: 0.10.0
libtpu: 0.0.40
codegen_flags: <defaults>
</compile_context>

<pallas_src>
import functools
import math

import jax
import jax.numpy as jnp
from jax.experimental import pallas as pl
from jax.experimental.pallas import tpu as pltpu


@functools.lru_cache(maxsize=1)
def _vmem_budgets():
    """(vmem_limit_bytes, block_budget_bytes, kron_bytes_limit), per generation."""
    try:
        cap = getattr(pltpu.get_tpu_info(), "vmem_capacity_bytes", 64 * 1024 * 1024)
    except Exception:  # no TPU info available -> conservative (v7x-safe) defaults
        cap = 64 * 1024 * 1024
    if cap >= 128 * 1024 * 1024:          # v5e / v6e: 128 MiB VMEM
        return 96 << 20, 48 << 20, 12 << 20
    return 32 << 20, 12 << 20, 4 << 20    # v7x (64 MiB) / unknown


def _bilinear_matrix(out_size: int, in_size: int) -> jnp.ndarray:
    """(out_size, in_size) interpolation matrix matching
    torch.nn.Upsample(mode='bilinear', align_corners=False) along one axis."""
    scale = in_size / out_size
    dst = jnp.arange(out_size, dtype=jnp.float32)
    src = (dst + 0.5) * scale - 0.5
    src = jnp.maximum(src, 0.0)                      # PyTorch clamps negatives
    i0 = jnp.minimum(jnp.floor(src).astype(jnp.int32), in_size - 1)
    i1 = jnp.minimum(i0 + 1, in_size - 1)
    w1 = src - i0.astype(jnp.float32)
    w0 = 1.0 - w1
    rows = jnp.arange(out_size)
    m = jnp.zeros((out_size, in_size), dtype=jnp.float32)
    m = m.at[rows, i0].add(w0)
    m = m.at[rows, i1].add(w1)
    return m


def _pick_channel_tile(nc: int, per_plane_bytes: int, *, budget_bytes: int,
                       align: int, rows_per_channel: int = 1) -> int:
    """Largest channel tile that (a) divides N*C, (b) keeps the per-step VMEM
    footprint (already including buffering factors) under `budget_bytes`,
    (c) is a multiple of `align` (sublane rule for the output/input blocks)
    or equals N*C, and (d) only prefers >=2 grid steps (v7x TC sharding) when
    that does NOT shrink the MXU M dimension below min(full_M, 128)."""
    divs = [d for d in range(1, nc + 1)
            if nc % d == 0 and (d % align == 0 or d == nc)]
    fitting = [d for d in divs if d * per_plane_bytes <= budget_bytes]
    if not fitting:
        # Smallest legal tile; may exceed the budget only when even a single
        # plane does not fit (unrealistically large spatial sizes).
        return min(divs)
    target_m = min(nc * rows_per_channel, 128)
    multi = [d for d in fitting
             if nc // d >= 2 and d * rows_per_channel >= target_m]
    return max(multi) if multi else max(fitting)


def _kron_kernel(x_ref, kt_ref, o_ref):
    # x_ref: (TC, H*W)   kt_ref: (H*W, Nout_tile)   o_ref: (TC, Nout_tile)
    xv = x_ref[...].astype(kt_ref.dtype)            # in-kernel cast (VPU, cheap)
    y = jnp.dot(xv, kt_ref[...], preferred_element_type=jnp.float32)
    o_ref[...] = jnp.maximum(y, 0.0).astype(o_ref.dtype)          # ReLU on f32 acc


def _separable_kernel(x_ref, wh_ref, wwt_ref, o_ref, t_ref):
    # x_ref: (TC, H, W)  wh_ref: (Hout, H)  wwt_ref: (W, Wout)
    # o_ref: (TC*Hout, Wout)  t_ref: (TC, Hout, W) VMEM scratch (compute dtype)
    tc, h_out, w = t_ref.shape
    cdt = wh_ref.dtype
    wh = wh_ref[...]

    # Row interpolation: short fori_loop (bounded live ranges, per-channel load
    # pushed into the loop); each iteration is one (Hout,H)@(H,W) matmul.
    def row_interp(i, carry):
        t_ref[i] = jnp.dot(wh, x_ref[i].astype(cdt),
                           preferred_element_type=jnp.float32).astype(t_ref.dtype)
        return carry

    jax.lax.fori_loop(0, tc, row_interp, 0, unroll=(tc <= 8))

    # Column interpolation: ONE flat matmul, M = TC*Hout fills the MXU and the
    # result stores lane-dense straight into the output block.
    y = jnp.dot(t_ref[...].reshape(tc * h_out, w), wwt_ref[...],
                preferred_element_type=jnp.float32)
    o_ref[...] = jnp.maximum(y, 0.0).astype(o_ref.dtype)          # ReLU on f32 acc


@functools.partial(jax.jit,
                   static_argnames=("stride", "force_separable", "compute_dtype"))
def bilinear_module(x: jnp.ndarray, stride: int = 2,
                    force_separable: bool = False,
                    compute_dtype=None) -> jnp.ndarray:
    """x: (N, C, H, W) -> ReLU(bilinear upsample by `stride`), (N, C, H*s, W*s).

    compute_dtype=None keeps the module's f32 semantics; jnp.bfloat16 halves
    operand VMEM traffic / doubles MXU rate (f32 accumulation kept)."""
    n, c, h, w = x.shape
    h_out, w_out = h * stride, w * stride
    nc = n * c
    out_dtype = x.dtype
    cdt = jnp.dtype(compute_dtype) if compute_dtype is not None else jnp.dtype(x.dtype)
    in_isz = jnp.dtype(x.dtype).itemsize
    out_isz = jnp.dtype(out_dtype).itemsize
    c_isz = cdt.itemsize

    vmem_limit, block_budget, kron_limit = _vmem_budgets()

    wh = _bilinear_matrix(h_out, h)                  # (Hout, H)
    ww = _bilinear_matrix(w_out, w)                  # (Wout, W)

    hw = h * w
    n_out = h_out * w_out
    kron_bytes = hw * n_out * c_isz

    if (not force_separable) and kron_bytes <= kron_limit:
        # --- fused path: out_flat = x_flat @ kron(Wh, Ww)^T ------------------
        kt = jnp.kron(wh, ww).T.astype(cdt)          # (H*W, Hout*Wout)
        # VMEM accounting includes the (double-buffered) constant operator.
        per_plane = 2 * (hw * in_isz + n_out * out_isz)
        budget = max(block_budget - 2 * kron_bytes, per_plane)
        tc = _pick_channel_tile(nc, per_plane, budget_bytes=budget, align=8)
        nsteps = nc // tc
        x2 = x.reshape(nc, hw)                       # metadata-only reshape
        cost = pl.CostEstimate(
            flops=2 * nc * hw * n_out, transcendentals=0,
            bytes_accessed=nc * hw * in_isz + nc * n_out * out_isz + kron_bytes)

        if nsteps >= 2 or n_out % 256 != 0:
            grid = (nsteps,)
            in_specs = [pl.BlockSpec((tc, hw), lambda i: (i, 0)),
                        pl.BlockSpec((hw, n_out), lambda i: (0, 0))]
            out_spec = pl.BlockSpec((tc, n_out), lambda i: (i, 0))
            dims = ("parallel",)
        else:
            # Single channel step: split output columns (>=128-lane tiles) so
            # v7x's 2 TensorCores both get work; x block is unchanged across j
            # so it is not re-fetched, and the resident kt block is halved.
            col = n_out // 2
            grid = (nsteps, 2)
            in_specs = [pl.BlockSpec((tc, hw), lambda i, j: (i, 0)),
                        pl.BlockSpec((hw, col), lambda i, j: (0, j))]
            out_spec = pl.BlockSpec((tc, col), lambda i, j: (i, j))
            dims = ("parallel", "parallel")

        out = pl.pallas_call(
            _kron_kernel,
            out_shape=jax.ShapeDtypeStruct((nc, n_out), out_dtype),
            grid_spec=pltpu.PrefetchScalarGridSpec(
                num_scalar_prefetch=0, grid=grid,
                in_specs=in_specs, out_specs=out_spec),
            compiler_params=pltpu.CompilerParams(
                dimension_semantics=dims, vmem_limit_bytes=vmem_limit),
            cost_estimate=cost,
        )(x2, kt)
        return out.reshape(n, c, h_out, w_out)

    # --- separable fallback for large spatial sizes --------------------------
    whc = wh.astype(cdt)                             # (Hout, H)
    wwt = ww.T.astype(cdt)                           # (W, Wout), pre-transposed once
    const_bytes = 2 * (h_out * h + w * w_out) * c_isz        # double-buffered consts
    per_plane = (2 * (h * w * in_isz + h_out * w_out * out_isz)   # in+out, 2-buffered
                 + h_out * w * c_isz)                             # scratch, 1 copy
    budget = max(block_budget - const_bytes, per_plane)
    align = 8 // math.gcd(h_out, 8)                  # keep (tc*Hout) % 8 == 0
    tc = _pick_channel_tile(nc, per_plane, budget_bytes=budget, align=align,
                            rows_per_channel=h_out)
    x3 = x.reshape(nc, h, w)                         # metadata-only reshape
    cost = pl.CostEstimate(
        flops=2 * nc * h_out * h * w + 2 * nc * h_out * w * w_out,
        transcendentals=0,
        bytes_accessed=(nc * h * w * in_isz + nc * h_out * w_out * out_isz
                        + (h_out * h + w * w_out) * c_isz))

    out = pl.pallas_call(
        _separable_kernel,
        out_shape=jax.ShapeDtypeStruct((nc * h_out, w_out), out_dtype),
        grid_spec=pltpu.PrefetchScalarGridSpec(
            num_scalar_prefetch=0, grid=(nc // tc,),
            in_specs=[pl.BlockSpec((tc, h, w), lambda i: (i, 0, 0)),
                      pl.BlockSpec((h_out, h), lambda i: (0, 0)),
                      pl.BlockSpec((w, w_out), lambda i: (0, 0))],
            out_specs=pl.BlockSpec((tc * h_out, w_out), lambda i: (i, 0)),
            scratch_shapes=[pltpu.VMEM((tc, h_out, w), cdt)]),
        compiler_params=pltpu.CompilerParams(
            dimension_semantics=("parallel",), vmem_limit_bytes=vmem_limit),
        cost_estimate=cost,
    )(x3, whc, wwt)
    return out.reshape(n, c, h_out, w_out)


def _reference(x: jnp.ndarray, stride: int) -> jnp.ndarray:
    # Pure-JAX reference: same separable bilinear matrices + ReLU.
    n, c, h, w = x.shape
    wh = _bilinear_matrix(h * stride, h)
    ww = _bilinear_matrix(w * stride, w)
    y = jnp.einsum("oh,nchw->ncow", wh, x)
    y = jnp.einsum("pw,ncow->ncop", ww, y)
    return jnp.maximum(y, 0.0)


if __name__ == "__main__":
    key = jax.random.PRNGKey(0)
    x = jax.random.normal(key, (2, 4, 16, 16), dtype=jnp.float32)
    stride = 2
    ref = _reference(x, stride)

    # primary (fused kron) path, f32 semantics
    out = jax.block_until_ready(bilinear_module(x, stride=stride))
    assert out.shape == (2, 4, 32, 32), out.shape
    assert jnp.allclose(out, ref, atol=1e-4, rtol=1e-4), float(
        jnp.max(jnp.abs(out - ref)))

    # separable fallback path (used for large spatial sizes), f32 semantics
    out2 = jax.block_until_ready(
        bilinear_module(x, stride=stride, force_separable=True))
    assert jnp.allclose(out2, ref, atol=1e-4, rtol=1e-4), float(
        jnp.max(jnp.abs(out2 - ref)))

    # optional bf16 compute path (stride-2 weights exact in bf16; x quantized)
    out3 = jax.block_until_ready(
        bilinear_module(x, stride=stride, compute_dtype=jnp.bfloat16))
    assert jnp.allclose(out3, ref, atol=5e-2, rtol=5e-2), float(
        jnp.max(jnp.abs(out3 - ref)))
    out4 = jax.block_until_ready(
        bilinear_module(x, stride=stride, force_separable=True,
                        compute_dtype=jnp.bfloat16))
    assert jnp.allclose(out4, ref, atol=5e-2, rtol=5e-2), float(
        jnp.max(jnp.abs(out4 - ref)))

    print("KERNEL_OK")
</pallas_src>

<mosaic_0001>
module attributes {stable_mosaic.version = 11 : i64} {
  func.func @_kron_kernel(%arg0: i32, %arg1: i32, %arg2: memref<8x256xf32, #tpu.memory_space<vmem>>, %arg3: memref<256x512xf32, #tpu.memory_space<vmem>>, %arg4: memref<8x512xf32, #tpu.memory_space<vmem>>) attributes {dimension_semantics = [#tpu.dimension_semantics<parallel>, #tpu.dimension_semantics<parallel>], iteration_bounds = array<i64: 1, 2>, scalar_prefetch = 0 : i64, scratch_operands = 0 : i64, tpu.core_type = #tpu.core_type<tc>, window_params = [{transform_indices = @transform_0, window_bounds = array<i64: 8, 256>}, {transform_indices = @transform_1, window_bounds = array<i64: 256, 512>}, {transform_indices = @transform_2, window_bounds = array<i64: 8, 512>}]} {
    %c0 = arith.constant 0 : index
    %c0_0 = arith.constant 0 : index
    %0 = vector.load %arg2[%c0, %c0_0] : memref<8x256xf32, #tpu.memory_space<vmem>>, vector<8x256xf32>
    %c0_1 = arith.constant 0 : index
    %c0_2 = arith.constant 0 : index
    %1 = vector.load %arg3[%c0_1, %c0_2] : memref<256x512xf32, #tpu.memory_space<vmem>>, vector<256x512xf32>
    %cst = arith.constant dense<0.000000e+00> : vector<8x512xf32>
    %2 = tpu.matmul %0, %1, %cst {dimension_numbers = #tpu.dot_dimension_numbers<[1], [0], [0], [1], [0, 0, 1, 1], [], []>} : vector<8x256xf32>, vector<256x512xf32>, vector<8x512xf32> -> vector<8x512xf32>
    %cst_3 = arith.constant 0.000000e+00 : f32
    %3 = vector.broadcast %cst_3 : f32 to vector<8x512xf32>
    %4 = arith.maximumf %2, %3 : vector<8x512xf32>
    %c0_4 = arith.constant 0 : index
    %c0_5 = arith.constant 0 : index
    %5 = vector.load %arg4[%c0_4, %c0_5] : memref<8x512xf32, #tpu.memory_space<vmem>>, vector<8x512xf32>
    tpu.vector_store %arg4[%c0_4, %c0_5], %4 {strides = array<i32>} : memref<8x512xf32, #tpu.memory_space<vmem>>, vector<8x512xf32>,
    return
  }
  func.func @transform_0(%arg0: i32, %arg1: i32) -> (i32, i32) {
    %c0_i32 = arith.constant 0 : i32
    %c0_i32_0 = arith.constant 0 : i32
    return %arg0, %c0_i32 : i32, i32
  }
  func.func @transform_1(%arg0: i32, %arg1: i32) -> (i32, i32) {
    %c0_i32 = arith.constant 0 : i32
    %c0_i32_0 = arith.constant 0 : i32
    return %c0_i32, %arg1 : i32, i32
  }
  func.func @transform_2(%arg0: i32, %arg1: i32) -> (i32, i32) {
    %c0_i32 = arith.constant 0 : i32
    return %arg0, %arg1 : i32, i32
  }
}

</mosaic_0001>

<llo_original>
// kernel: bilinear_module.1
$region0: #{bilinear_module.1}
  #allocation0 [shape = 'u32[]', space=smem, size = 0x4, offset = 0x4, fixed_abs, tag = 'smem constant byte address 0x4 - core index']
  #allocation1 [shape = 'u32[72,128]{1,0:T(1,128)}', space=vmem, size = 0x9000, scoped, tag = 'internal scratch']
  %s0 = inlined_call_operand.vmem [shape: f32[8,256], index: 0, kind: input, shape index: {}]
  %s1 = inlined_call_operand.vmem [shape: f32[256,1024], index: 1, kind: input, shape index: {}]
  %s2 = inlined_call_operand.vmem [shape: f32[8,1024], index: 2, kind: output, shape index: {}]
  %s3 = sld [smem:[#allocation0]]
  $region64: #{bilinear_module.1} parent=0
    _
  %s5 = ssub.s32 1, %s3
  %s6 = scalar_select 0, %s5, %s3
  $region1: #{bilinear_module.1} parent=0
    #allocation2 [shape = 'u8[1048576]{0}', space=vmem, size = 0x100000, scoped, tag = 'input window, operand 1']
    loop: start=0, step=1, limit=4
    $region2: #{bilinear_module.1} parent=1 // loop_pre_header
      _
    $region3: #{bilinear_module.1} parent=1 // loop_header
      %s8 = sphi 0, %s12
      %p9 = scmp.ge.s32.totalorder %s8, 4
      %s15 = sphi 0, %s27
      %s16 = sphi 0, %s23
      %s17 = sphi 0, %s15
      %s18 = sphi 0, %s16
      %s19 = sphi 0, %s17
      %s20 = sphi 0, %s18
      %s30 = sphi 0, %s32
      %s33 = sphi 0, %s30
      %s34 = sphi 0, %s33
      %s50 = sphi 0, %s34
      %s56 = sphi 0, %s58
      %s59 = sphi 0, %s56
      %s60 = sphi 0, %s59
      %s76 = sphi 0, %s60
      %s84 = sphi 0, %s86
      %s87 = sphi 0, %s84
      %s88 = sphi 0, %s87
      %s104 = sphi 0, %s88
    $region4: #{bilinear_module.1} parent=1 // loop_header_branch
      %11 = sbr.rel (%p9) target = $region8
    $region5: #{bilinear_module.1} parent=1 // loop_body
      %s13 = ssub.s32 %s8, 1
      %s14 = ssub.s32 %s8, 2
      %s21 = sadd.s32 1, %s16
      %p22 = scmp.ge.s32.totalorder %s21, 2
      %s23 = scalar_select %p22, 0, %s21
      %s24 = sadd.s32 1, %s15
      %s25 = scalar_select %p22, %s24, %s15
      %p26 = scmp.ge.s32.totalorder %s25, 1
      %s27 = scalar_select %p26, 0, %s25
      %s28 = ssub.s32 %s15, %s27
      %p29 = scmp.eq.s32.totalorder %s28, 0
      %s31 = sadd.s32 %s30, 1
      %s32 = scalar_select %p29, %s30, %s31
      %p35 = pneg %p29
      %p36 = scmp.eq.s32.totalorder %s8, 1
      %p37 = por %p35, %p36
      %p38 = scmp.ne.s32.totalorder %s30, %s33
      %p39 = scmp.eq.s32.totalorder %s8, 0
      %p40 = por %p38, %p39
      %p41 = scmp.ne.s32.totalorder %s30, %s33
      %p42 = scmp.eq.s32.totalorder %s13, 1
      %p43 = por %p41, %p42
      %p44 = scmp.ne.s32.totalorder %s33, %s34
      %p45 = scmp.eq.s32.totalorder %s13, 0
      %p46 = por %p44, %p45
      %p47 = scmp.ne.s32.totalorder %s33, %s34
      %p48 = scmp.eq.s32.totalorder %s14, 1
      %p49 = por %p47, %p48
      %p51 = scmp.ne.s32.totalorder %s34, %s50
      %p52 = scmp.eq.s32.totalorder %s14, 0
      %p53 = por %p51, %p52
      %s54 = ssub.s32 %s16, %s23
      %p55 = scmp.eq.s32.totalorder %s54, 0
      %s57 = sadd.s32 %s56, 1
      %s58 = scalar_select %p55, %s56, %s57
      %p61 = pneg %p55
      %p62 = scmp.eq.s32.totalorder %s8, 1
      %p63 = por %p61, %p62
      %p64 = scmp.ne.s32.totalorder %s56, %s59
      %p65 = scmp.eq.s32.totalorder %s8, 0
      %p66 = por %p64, %p65
      %p67 = scmp.ne.s32.totalorder %s56, %s59
      %p68 = scmp.eq.s32.totalorder %s13, 1
      %p69 = por %p67, %p68
      %p70 = scmp.ne.s32.totalorder %s59, %s60
      %p71 = scmp.eq.s32.totalorder %s13, 0
      %p72 = por %p70, %p71
      %p73 = scmp.ne.s32.totalorder %s59, %s60
      %p74 = scmp.eq.s32.totalorder %s14, 1
      %p75 = por %p73, %p74
      %p77 = scmp.ne.s32.totalorder %s60, %s76
      %p78 = scmp.eq.s32.totalorder %s14, 0
      %p79 = por %p77, %p78
      %s80 = ssub.s32 %s15, %s27
      %s81 = ssub.s32 %s16, %s23
      %s82 = sor.u32 %s80, %s81
      %p83 = scmp.eq.s32.totalorder %s82, 0
      %s85 = sadd.s32 %s84, 1
      %s86 = scalar_select %p83, %s84, %s85
      %p89 = pneg %p83
      %p90 = scmp.eq.s32.totalorder %s8, 1
      %p91 = por %p89, %p90
      %p92 = scmp.ne.s32.totalorder %s84, %s87
      %p93 = scmp.eq.s32.totalorder %s8, 0
      %p94 = por %p92, %p93
      %p95 = scmp.ne.s32.totalorder %s84, %s87
      %p96 = scmp.eq.s32.totalorder %s13, 1
      %p97 = por %p95, %p96
      %p98 = scmp.ne.s32.totalorder %s87, %s88
      %p99 = scmp.eq.s32.totalorder %s13, 0
      %p100 = por %p98, %p99
      %p101 = scmp.ne.s32.totalorder %s87, %s88
      %p102 = scmp.eq.s32.totalorder %s14, 1
      %p103 = por %p101, %p102
      %p105 = scmp.ne.s32.totalorder %s88, %s104
      %p106 = scmp.eq.s32.totalorder %s14, 0
      %p107 = por %p105, %p106
      %p108 = scmp.le.s32.totalorder 1, %s8
      %p109 = scmp.lt.s32.totalorder %s8, 3
      %p110 = pnand %p108, %p109
      %p111 = pneg %p110
      // Predicated region
      $region9: #{bilinear_module.1} parent=5 // pred_check
        _
      $region10: #{bilinear_module.1} parent=5 // pred_check_branch
        %113 = sbr.rel (%p110) target = $region12
      $region11: #{bilinear_module.1} parent=5 // pred_region
        %s114 = ssub.s32 %s8, 1
        // Predicated region
        $region13: #{bilinear_module.1} parent=11 // pred_check
          %p115 = pneg %p46
        $region14: #{bilinear_module.1} parent=11 // pred_check_branch
          %117 = sbr.rel (%p115) target = $region16
        $region15: #{bilinear_module.1} parent=11 // pred_region
          %p118 = scmp.lt.s32.totalorder %s17, 0
          %s119 = scalar_select %p118, %s17, 0
          %s120 = smul.addr %s119, 2
          %s121 = smul.addr %s120, 8
          %s122 = scalar_lea.vmem %s0, %s121
        $region16: #{bilinear_module.1} parent=11 // pred_fallthru
          _
      $region12: #{bilinear_module.1} parent=5 // pred_fallthru
        _
      %p123 = scmp.lt.s32.totalorder %s8, 2
      // Predicated region
      $region17: #{bilinear_module.1} parent=5 // pred_check
        %p124 = pneg %p123
      $region18: #{bilinear_module.1} parent=5 // pred_check_branch
        %126 = sbr.rel (%p124) target = $region20
      $region19: #{bilinear_module.1} parent=5 // pred_region
        // Predicated region
        $region21: #{bilinear_module.1} parent=19 // pred_check
          %p127 = pneg %p66
        $region22: #{bilinear_module.1} parent=19 // pred_check_branch
          %129 = sbr.rel (%p127) target = $region24
        $region23: #{bilinear_module.1} parent=19 // pred_region
          %s130 = sand.u32 %s56, 1
          %s131 = sand.u32 %s56, 1
          %s132 = smul.addr %s131, 1024
          %s133 = scalar_lea.vmem [#allocation2], %s132
          %s134 = smul.u32 4, %s16
          %s135 = smul.addr %s134, 8
          %s136 = scalar_lea.vmem %s1, %s135
          // Predicated region
          $region25: #{bilinear_module.1} parent=23 // pred_check
            _
          $region26: #{bilinear_module.1} parent=23 // pred_check_branch
            %138 = sbr.rel (0) target = $region28
          $region27: #{bilinear_module.1} parent=23 // pred_region
            // Predicated region
            $region29: #{bilinear_module.1} parent=27 // pred_check
              _
            $region30: #{bilinear_module.1} parent=27 // pred_check_branch
              %140 = sbr.rel (0) target = $region32
            $region31: #{bilinear_module.1} parent=27 // pred_region
              loop: start=0, step=1, limit=1
              $region33: #{bilinear_module.1} parent=31 // loop_pre_header
                _
              $region34: #{bilinear_module.1} parent=31 // loop_header
                %s142 = sphi 0, %s146
                %p143 = scmp.ge.s32.totalorder %s142, 1
                %s147 = sphi %s136, %s136
                %s148 = sphi %s133, %s133
              $region35: #{bilinear_module.1} parent=31 // loop_header_branch
                %145 = sbr.rel (%p143) target = $region39
              $region36: #{bilinear_module.1} parent=31 // loop_body
                %v149 = vld [vmem:[%s147] sm:$0xff]
                %150 = vst [vmem:[%s148] sm:$0xff] %v149
                %v151 = vld [vmem:[%s147 + $0x8] sm:$0xff]
                %152 = vst [vmem:[%s148 + $0x8] sm:$0xff] %v151
                %v153 = vld [vmem:[%s147 + $0x10] sm:$0xff]
                %154 = vst [vmem:[%s148 + $0x10] sm:$0xff] %v153
                %v155 = vld [vmem:[%s147 + $0x18] sm:$0xff]
                %156 = vst [vmem:[%s148 + $0x18] sm:$0xff] %v155
                %v157 = vld [vmem:[%s147 + $0x40] sm:$0xff]
                %158 = vst [vmem:[%s148 + $0x20] sm:$0xff] %v157
                %v159 = vld [vmem:[%s147 + $0x48] sm:$0xff]
                %160 = vst [vmem:[%s148 + $0x28] sm:$0xff] %v159
                %v161 = vld [vmem:[%s147 + $0x50] sm:$0xff]
                %162 = vst [vmem:[%s148 + $0x30] sm:$0xff] %v161
                %v163 = vld [vmem:[%s147 + $0x58] sm:$0xff]
                %164 = vst [vmem:[%s148 + $0x38] sm:$0xff] %v163
                %v165 = vld [vmem:[%s147 + $0x80] sm:$0xff]
                %166 = vst [vmem:[%s148 + $0x40] sm:$0xff] %v165
                %v167 = vld [vmem:[%s147 + $0x88] sm:$0xff]
                %168 = vst [vmem:[%s148 + $0x48] sm:$0xff] %v167
                %v169 = vld [vmem:[%s147 + $0x90] sm:$0xff]
                %170 = vst [vmem:[%s148 + $0x50] sm:$0xff] %v169
                %v171 = vld [vmem:[%s147 + $0x98] sm:$0xff]
                %172 = vst [vmem:[%s148 + $0x58] sm:$0xff] %v171
                %v173 = vld [vmem:[%s147 + $0xc0] sm:$0xff]
                %174 = vst [vmem:[%s148 + $0x60] sm:$0xff] %v173
                %v175 = vld [vmem:[%s147 + $0xc8] sm:$0xff]
                %176 = vst [vmem:[%s148 + $0x68] sm:$0xff] %v175
                %v177 = vld [vmem:[%s147 + $0xd0] sm:$0xff]
                %178 = vst [vmem:[%s148 + $0x70] sm:$0xff] %v177
                %v179 = vld [vmem:[%s147 + $0xd8] sm:$0xff]
                %180 = vst [vmem:[%s148 + $0x78] sm:$0xff] %v179
                %v181 = vld [vmem:[%s147 + $0x100] sm:$0xff]
                %182 = vst [vmem:[%s148 + $0x80] sm:$0xff] %v181
                %v183 = vld [vmem:[%s147 + $0x108] sm:$0xff]
                %184 = vst [vmem:[%s148 + $0x88] sm:$0xff] %v183
                %v185 = vld [vmem:[%s147 + $0x110] sm:$0xff]
                %186 = vst [vmem:[%s148 + $0x90] sm:$0xff] %v185
                %v187 = vld [vmem:[%s147 + $0x118] sm:$0xff]
                %188 = vst [vmem:[%s148 + $0x98] sm:$0xff] %v187
                %v189 = vld [vmem:[%s147 + $0x140] sm:$0xff]
                %190 = vst [vmem:[%s148 + $0xa0] sm:$0xff] %v189
                %v191 = vld [vmem:[%s147 + $0x148] sm:$0xff]
                %192 = vst [vmem:[%s148 + $0xa8] sm:$0xff] %v191
                %v193 = vld [vmem:[%s147 + $0x150] sm:$0xff]
                %194 = vst [vmem:[%s148 + $0xb0] sm:$0xff] %v193
                %v195 = vld [vmem:[%s147 + $0x158] sm:$0xff]
                %196 = vst [vmem:[%s148 + $0xb8] sm:$0xff] %v195
                %v197 = vld [vmem:[%s147 + $0x180] sm:$0xff]
                %198 = vst [vmem:[%s148 + $0xc0] sm:$0xff] %v197
                %v199 = vld [vmem:[%s147 + $0x188] sm:$0xff]
                %200 = vst [vmem:[%s148 + $0xc8] sm:$0xff] %v199
                %v201 = vld [vmem:[%s147 + $0x190] sm:$0xff]
                %202 = vst [vmem:[%s148 + $0xd0] sm:$0xff] %v201
                %v203 = vld [vmem:[%s147 + $0x198] sm:$0xff]
                %204 = vst [vmem:[%s148 + $0xd8] sm:$0xff] %v203
                %v205 = vld [vmem:[%s147 + $0x1c0] sm:$0xff]
                %206 = vst [vmem:[%s148 + $0xe0] sm:$0xff] %v205
                %v207 = vld [vmem:[%s147 + $0x1c8] sm:$0xff]
                %208 = vst [vmem:[%s148 + $0xe8] sm:$0xff] %v207
                %v209 = vld [vmem:[%s147 + $0x1d0] sm:$0xff]
                %210 = vst [vmem:[%s148 + $0xf0] sm:$0xff] %v209
                %v211 = vld [vmem:[%s147 + $0x1d8] sm:$0xff]
                %212 = vst [vmem:[%s148 + $0xf8] sm:$0xff] %v211
                %v213 = vld [vmem:[%s147 + $0x200] sm:$0xff]
                %214 = vst [vmem:[%s148 + $0x100] sm:$0xff] %v213
                %v215 = vld [vmem:[%s147 + $0x208] sm:$0xff]
                %216 = vst [vmem:[%s148 + $0x108] sm:$0xff] %v215
                %v217 = vld [vmem:[%s147 + $0x210] sm:$0xff]
                %218 = vst [vmem:[%s148 + $0x110] sm:$0xff] %v217
                %v219 = vld [vmem:[%s147 + $0x218] sm:$0xff]
                %220 = vst [vmem:[%s148 + $0x118] sm:$0xff] %v219
                %v221 = vld [vmem:[%s147 + $0x240] sm:$0xff]
                %222 = vst [vmem:[%s148 + $0x120] sm:$0xff] %v221
                %v223 = vld [vmem:[%s147 + $0x248] sm:$0xff]
                %224 = vst [vmem:[%s148 + $0x128] sm:$0xff] %v223
                %v225 = vld [vmem:[%s147 + $0x250] sm:$0xff]
                %226 = vst [vmem:[%s148 + $0x130] sm:$0xff] %v225
                %v227 = vld [vmem:[%s147 + $0x258] sm:$0xff]
                %228 = vst [vmem:[%s148 + $0x138] sm:$0xff] %v227
                %v229 = vld [vmem:[%s147 + $0x280] sm:$0xff]
                %230 = vst [vmem:[%s148 + $0x140] sm:$0xff] %v229
                %v231 = vld [vmem:[%s147 + $0x288] sm:$0xff]
                %232 = vst [vmem:[%s148 + $0x148] sm:$0xff] %v231
                %v233 = vld [vmem:[%s147 + $0x290] sm:$0xff]
                %234 = vst [vmem:[%s148 + $0x150] sm:$0xff] %v233
                %v235 = vld [vmem:[%s147 + $0x298] sm:$0xff]
                %236 = vst [vmem:[%s148 + $0x158] sm:$0xff] %v235
                %v237 = vld [vmem:[%s147 + $0x2c0] sm:$0xff]
                %238 = vst [vmem:[%s148 + $0x160] sm:$0xff] %v237
                %v239 = vld [vmem:[%s147 + $0x2c8] sm:$0xff]
                %240 = vst [vmem:[%s148 + $0x168] sm:$0xff] %v239
                %v241 = vld [vmem:[%s147 + $0x2d0] sm:$0xff]
                %242 = vst [vmem:[%s148 + $0x170] sm:$0xff] %v241
                %v243 = vld [vmem:[%s147 + $0x2d8] sm:$0xff]
                %244 = vst [vmem:[%s148 + $0x178] sm:$0xff] %v243
                %v245 = vld [vmem:[%s147 + $0x300] sm:$0xff]
                %246 = vst [vmem:[%s148 + $0x180] sm:$0xff] %v245
                %v247 = vld [vmem:[%s147 + $0x308] sm:$0xff]
                %248 = vst [vmem:[%s148 + $0x188] sm:$0xff] %v247
                %v249 = vld [vmem:[%s147 + $0x310] sm:$0xff]
                %250 = vst [vmem:[%s148 + $0x190] sm:$0xff] %v249
                %v251 = vld [vmem:[%s147 + $0x318] sm:$0xff]
                %252 = vst [vmem:[%s148 + $0x198] sm:$0xff] %v251
                %v253 = vld [vmem:[%s147 + $0x340] sm:$0xff]
                %254 = vst [vmem:[%s148 + $0x1a0] sm:$0xff] %v253
                %v255 = vld [vmem:[%s147 + $0x348] sm:$0xff]
                %256 = vst [vmem:[%s148 + $0x1a8] sm:$0xff] %v255
                %v257 = vld [vmem:[%s147 + $0x350] sm:$0xff]
                %258 = vst [vmem:[%s148 + $0x1b0] sm:$0xff] %v257
                %v259 = vld [vmem:[%s147 + $0x358] sm:$0xff]
                %260 = vst [vmem:[%s148 + $0x1b8] sm:$0xff] %v259
                %v261 = vld [vmem:[%s147 + $0x380] sm:$0xff]
                %262 = vst [vmem:[%s148 + $0x1c0] sm:$0xff] %v261
                %v263 = vld [vmem:[%s147 + $0x388] sm:$0xff]
                %264 = vst [vmem:[%s148 + $0x1c8] sm:$0xff] %v263
                %v265 = vld [vmem:[%s147 + $0x390] sm:$0xff]
                %266 = vst [vmem:[%s148 + $0x1d0] sm:$0xff] %v265
                %v267 = vld [vmem:[%s147 + $0x398] sm:$0xff]
                %268 = vst [vmem:[%s148 + $0x1d8] sm:$0xff] %v267
                %v269 = vld [vmem:[%s147 + $0x3c0] sm:$0xff]
                %270 = vst [vmem:[%s148 + $0x1e0] sm:$0xff] %v269
                %v271 = vld [vmem:[%s147 + $0x3c8] sm:$0xff]
                %272 = vst [vmem:[%s148 + $0x1e8] sm:$0xff] %v271
                %v273 = vld [vmem:[%s147 + $0x3d0] sm:$0xff]
                %274 = vst [vmem:[%s148 + $0x1f0] sm:$0xff] %v273
                %v275 = vld [vmem:[%s147 + $0x3d8] sm:$0xff]
                %276 = vst [vmem:[%s148 + $0x1f8] sm:$0xff] %v275
                %v277 = vld [vmem:[%s147 + $0x400] sm:$0xff]
                %278 = vst [vmem:[%s148 + $0x200] sm:$0xff] %v277
                %v279 = vld [vmem:[%s147 + $0x408] sm:$0xff]
                %280 = vst [vmem:[%s148 + $0x208] sm:$0xff] %v279
                %v281 = vld [vmem:[%s147 + $0x410] sm:$0xff]
                %282 = vst [vmem:[%s148 + $0x210] sm:$0xff] %v281
                %v283 = vld [vmem:[%s147 + $0x418] sm:$0xff]
                %284 = vst [vmem:[%s148 + $0x218] sm:$0xff] %v283
                %v285 = vld [vmem:[%s147 + $0x440] sm:$0xff]
                %286 = vst [vmem:[%s148 + $0x220] sm:$0xff] %v285
                %v287 = vld [vmem:[%s147 + $0x448] sm:$0xff]
                %288 = vst [vmem:[%s148 + $0x228] sm:$0xff] %v287
                %v289 = vld [vmem:[%s147 + $0x450] sm:$0xff]
                %290 = vst [vmem:[%s148 + $0x230] sm:$0xff] %v289
                %v291 = vld [vmem:[%s147 + $0x458] sm:$0xff]
                %292 = vst [vmem:[%s148 + $0x238] sm:$0xff] %v291
                %v293 = vld [vmem:[%s147 + $0x480] sm:$0xff]
                %294 = vst [vmem:[%s148 + $0x240] sm:$0xff] %v293
                %v295 = vld [vmem:[%s147 + $0x488] sm:$0xff]
                %296 = vst [vmem:[%s148 + $0x248] sm:$0xff] %v295
                %v297 = vld [vmem:[%s147 + $0x490] sm:$0xff]
                %298 = vst [vmem:[%s148 + $0x250] sm:$0xff] %v297
                %v299 = vld [vmem:[%s147 + $0x498] sm:$0xff]
                %300 = vst [vmem:[%s148 + $0x258] sm:$0xff] %v299
                %v301 = vld [vmem:[%s147 + $0x4c0] sm:$0xff]
                %302 = vst [vmem:[%s148 + $0x260] sm:$0xff] %v301
                %v303 = vld [vmem:[%s147 + $0x4c8] sm:$0xff]
                %304 = vst [vmem:[%s148 + $0x268] sm:$0xff] %v303
                %v305 = vld [vmem:[%s147 + $0x4d0] sm:$0xff]
                %306 = vst [vmem:[%s148 + $0x270] sm:$0xff] %v305
                %v307 = vld [vmem:[%s147 + $0x4d8] sm:$0xff]
                %308 = vst [vmem:[%s148 + $0x278] sm:$0xff] %v307
                %v309 = vld [vmem:[%s147 + $0x500] sm:$0xff]
                %310 = vst [vmem:[%s148 + $0x280] sm:$0xff] %v309
                %v311 = vld [vmem:[%s147 + $0x508] sm:$0xff]
                %312 = vst [vmem:[%s148 + $0x288] sm:$0xff] %v311
                %v313 = vld [vmem:[%s147 + $0x510] sm:$0xff]
                %314 = vst [vmem:[%s148 + $0x290] sm:$0xff] %v313
                %v315 = vld [vmem:[%s147 + $0x518] sm:$0xff]
                %316 = vst [vmem:[%s148 + $0x298] sm:$0xff] %v315
                %v317 = vld [vmem:[%s147 + $0x540] sm:$0xff]
                %318 = vst [vmem:[%s148 + $0x2a0] sm:$0xff] %v317
                %v319 = vld [vmem:[%s147 + $0x548] sm:$0xff]
                %320 = vst [vmem:[%s148 + $0x2a8] sm:$0xff] %v319
                %v321 = vld [vmem:[%s147 + $0x550] sm:$0xff]
                %322 = vst [vmem:[%s148 + $0x2b0] sm:$0xff] %v321
                %v323 = vld [vmem:[%s147 + $0x558] sm:$0xff]
                %324 = vst [vmem:[%s148 + $0x2b8] sm:$0xff] %v323
                %v325 = vld [vmem:[%s147 + $0x580] sm:$0xff]
                %326 = vst [vmem:[%s148 + $0x2c0] sm:$0xff] %v325
                %v327 = vld [vmem:[%s147 + $0x588] sm:$0xff]
                %328 = vst [vmem:[%s148 + $0x2c8] sm:$0xff] %v327
                %v329 = vld [vmem:[%s147 + $0x590] sm:$0xff]
                %330 = vst [vmem:[%s148 + $0x2d0] sm:$0xff] %v329
                %v331 = vld [vmem:[%s147 + $0x598] sm:$0xff]
                %332 = vst [vmem:[%s148 + $0x2d8] sm:$0xff] %v331
                %v333 = vld [vmem:[%s147 + $0x5c0] sm:$0xff]
                %334 = vst [vmem:[%s148 + $0x2e0] sm:$0xff] %v333
                %v335 = vld [vmem:[%s147 + $0x5c8] sm:$0xff]
                %336 = vst [vmem:[%s148 + $0x2e8] sm:$0xff] %v335
                %v337 = vld [vmem:[%s147 + $0x5d0] sm:$0xff]
                %338 = vst [vmem:[%s148 + $0x2f0] sm:$0xff] %v337
                %v339 = vld [vmem:[%s147 + $0x5d8] sm:$0xff]
                %340 = vst [vmem:[%s148 + $0x2f8] sm:$0xff] %v339
                %v341 = vld [vmem:[%s147 + $0x600] sm:$0xff]
                %342 = vst [vmem:[%s148 + $0x300] sm:$0xff] %v341
                %v343 = vld [vmem:[%s147 + $0x608] sm:$0xff]
                %344 = vst [vmem:[%s148 + $0x308] sm:$0xff] %v343
                %v345 = vld [vmem:[%s147 + $0x610] sm:$0xff]
                %346 = vst [vmem:[%s148 + $0x310] sm:$0xff] %v345
                %v347 = vld [vmem:[%s147 + $0x618] sm:$0xff]
                %348 = vst [vmem:[%s148 + $0x318] sm:$0xff] %v347
                %v349 = vld [vmem:[%s147 + $0x640] sm:$0xff]
                %350 = vst [vmem:[%s148 + $0x320] sm:$0xff] %v349
                %v351 = vld [vmem:[%s147 + $0x648] sm:$0xff]
                %352 = vst [vmem:[%s148 + $0x328] sm:$0xff] %v351
                %v353 = vld [vmem:[%s147 + $0x650] sm:$0xff]
                %354 = vst [vmem:[%s148 + $0x330] sm:$0xff] %v353
                %v355 = vld [vmem:[%s147 + $0x658] sm:$0xff]
                %356 = vst [vmem:[%s148 + $0x338] sm:$0xff] %v355
                %v357 = vld [vmem:[%s147 + $0x680] sm:$0xff]
                %358 = vst [vmem:[%s148 + $0x340] sm:$0xff] %v357
                %v359 = vld [vmem:[%s147 + $0x688] sm:$0xff]
                %360 = vst [vmem:[%s148 + $0x348] sm:$0xff] %v359
                %v361 = vld [vmem:[%s147 + $0x690] sm:$0xff]
                %362 = vst [vmem:[%s148 + $0x350] sm:$0xff] %v361
                %v363 = vld [vmem:[%s147 + $0x698] sm:$0xff]
                %364 = vst [vmem:[%s148 + $0x358] sm:$0xff] %v363
                %v365 = vld [vmem:[%s147 + $0x6c0] sm:$0xff]
                %366 = vst [vmem:[%s148 + $0x360] sm:$0xff] %v365
                %v367 = vld [vmem:[%s147 + $0x6c8] sm:$0xff]
                %368 = vst [vmem:[%s148 + $0x368] sm:$0xff] %v367
                %v369 = vld [vmem:[%s147 + $0x6d0] sm:$0xff]
                %370 = vst [vmem:[%s148 + $0x370] sm:$0xff] %v369
                %v371 = vld [vmem:[%s147 + $0x6d8] sm:$0xff]
                %372 = vst [vmem:[%s148 + $0x378] sm:$0xff] %v371
                %v373 = vld [vmem:[%s147 + $0x700] sm:$0xff]
                %374 = vst [vmem:[%s148 + $0x380] sm:$0xff] %v373
                %v375 = vld [vmem:[%s147 + $0x708] sm:$0xff]
                %376 = vst [vmem:[%s148 + $0x388] sm:$0xff] %v375
                %v377 = vld [vmem:[%s147 + $0x710] sm:$0xff]
                %378 = vst [vmem:[%s148 + $0x390] sm:$0xff] %v377
                %v379 = vld [vmem:[%s147 + $0x718] sm:$0xff]
                %380 = vst [vmem:[%s148 + $0x398] sm:$0xff] %v379
                %v381 = vld [vmem:[%s147 + $0x740] sm:$0xff]
                %382 = vst [vmem:[%s148 + $0x3a0] sm:$0xff] %v381
                %v383 = vld [vmem:[%s147 + $0x748] sm:$0xff]
                %384 = vst [vmem:[%s148 + $0x3a8] sm:$0xff] %v383
                %v385 = vld [vmem:[%s147 + $0x750] sm:$0xff]
                %386 = vst [vmem:[%s148 + $0x3b0] sm:$0xff] %v385
                %v387 = vld [vmem:[%s147 + $0x758] sm:$0xff]
                %388 = vst [vmem:[%s148 + $0x3b8] sm:$0xff] %v387
                %v389 = vld [vmem:[%s147 + $0x780] sm:$0xff]
                %390 = vst [vmem:[%s148 + $0x3c0] sm:$0xff] %v389
                %v391 = vld [vmem:[%s147 + $0x788] sm:$0xff]
                %392 = vst [vmem:[%s148 + $0x3c8] sm:$0xff] %v391
                %v393 = vld [vmem:[%s147 + $0x790] sm:$0xff]
                %394 = vst [vmem:[%s148 + $0x3d0] sm:$0xff] %v393
                %v395 = vld [vmem:[%s147 + $0x798] sm:$0xff]
                %396 = vst [vmem:[%s148 + $0x3d8] sm:$0xff] %v395
                %v397 = vld [vmem:[%s147 + $0x7c0] sm:$0xff]
                %398 = vst [vmem:[%s148 + $0x3e0] sm:$0xff] %v397
                %v399 = vld [vmem:[%s147 + $0x7c8] sm:$0xff]
                %400 = vst [vmem:[%s148 + $0x3e8] sm:$0xff] %v399
                %v401 = vld [vmem:[%s147 + $0x7d0] sm:$0xff]
                %402 = vst [vmem:[%s148 + $0x3f0] sm:$0xff] %v401
                %v403 = vld [vmem:[%s147 + $0x7d8] sm:$0xff]
                %404 = vst [vmem:[%s148 + $0x3f8] sm:$0xff] %v403
              $region37: #{bilinear_module.1} parent=31 // loop_footer
                %s146 = sadd.s32 1, %s142
              $region38: #{bilinear_module.1} parent=31 // loop_footer_branch
                %141 = sbr.rel target = $region34
              $region39: #{bilinear_module.1} parent=31 // loop_exit
                _
            $region32: #{bilinear_module.1} parent=27 // pred_fallthru
              _
            // Predicated region
            $region40: #{bilinear_module.1} parent=27 // pred_check
              _
            $region41: #{bilinear_module.1} parent=27 // pred_check_branch
              %406 = sbr.rel target = $region43
            $region42: #{bilinear_module.1} parent=27 // pred_region
              _
            $region43: #{bilinear_module.1} parent=27 // pred_fallthru
              _
          $region28: #{bilinear_module.1} parent=23 // pred_fallthru
            _
          %407 = vnop
        $region24: #{bilinear_module.1} parent=19 // pred_fallthru
          _
      $region20: #{bilinear_module.1} parent=5 // pred_fallthru
        _
      %p408 = scmp.le.s32.totalorder 1, %s8
      %p409 = scmp.lt.s32.totalorder %s8, 3
      %p410 = pnand %p408, %p409
      %p411 = pneg %p410
      // Predicated region
      $region44: #{bilinear_module.1} parent=5 // pred_check
        _
      $region45: #{bilinear_module.1} parent=5 // pred_check_branch
        %413 = sbr.rel (%p410) target = $region47
      $region46: #{bilinear_module.1} parent=5 // pred_region
        %s414 = ssub.s32 %s8, 1
        %s415 = sand.u32 %s59, 1
        %s416 = sand.u32 %s59, 1
        %s417 = smul.addr %s416, 1024
        %s418 = scalar_lea.vmem [#allocation2], %s417
        // Predicated region
        $region48: #{bilinear_module.1} parent=46 // pred_check
          %p419 = pneg %p72
        $region49: #{bilinear_module.1} parent=46 // pred_check_branch
          %421 = sbr.rel (%p419) target = $region51
        $region50: #{bilinear_module.1} parent=46 // pred_region
          _
        $region51: #{bilinear_module.1} parent=46 // pred_fallthru
          _
        %p422 = scmp.lt.s32.totalorder %s17, 0
        %s423 = scalar_select %p422, %s17, 0
        %s424 = smul.addr %s423, 2
        %s425 = smul.addr %s424, 8
        %s426 = scalar_lea.vmem %s0, %s425
        %p427 = pneg %p46
        %p428 = pneg %p43
        %s429 = sand.u32 %s59, 1
        %s430 = sand.u32 %s59, 1
        %s431 = smul.addr %s430, 1024
        %s432 = scalar_lea.vmem [#allocation2], %s431
        %p433 = pneg %p72
        %p434 = pneg %p69
        %p435 = pneg %p100
        %p436 = pneg %p97
        %s437 = smul.u32 4, %s18
        %p438 = scmp.lt.s32.totalorder %s17, 0
        %s439 = scalar_select %p438, %s17, 0
        %p440 = scmp.lt.s32.totalorder %s437, 7
        %s441 = scalar_select %p440, %s437, 7
        %s442 = smul.addr %s439, 8
        %s443 = sadd.s32 %s441, %s442
        %s444 = smul.addr %s443, 8
        %s445 = scalar_lea.vmem %s2, %s444
        %p446 = scmp.lt.s32.totalorder %s17, 0
        %s447 = scalar_select %p446, %s17, 0
        %s448 = smul.addr %s447, 2
        %s449 = smul.addr %s448, 8
        %s450 = scalar_lea.vmem %s0, %s449
        %s451 = smul.u32 4, %s18
        %s452 = smul.u32 4, %s18
        %p453 = scmp.lt.s32.totalorder %s17, 0
        %s454 = scalar_select %p453, %s17, 0
        %p455 = scmp.lt.s32.totalorder %s452, 7
        %s456 = scalar_select %p455, %s452, 7
        %s457 = smul.addr %s454, 8
        %s458 = sadd.s32 %s456, %s457
        %s459 = smul.addr %s458, 8
        %s460 = scalar_lea.vmem %s2, %s459
        %s461 = smul.u32 4, %s18
        %v462 = vld [vmem:[%s450] sm:$0xff]
        %v463 = vld [vmem:[%s450 + $0x8] sm:$0xff]
        %v464 = vld [vmem:[%s418] sm:$0xff]
        %v465 = vld [vmem:[%s418 + $0x8] sm:$0xff]
        %v466 = vld [vmem:[%s418 + $0x10] sm:$0xff]
        %v467 = vld [vmem:[%s418 + $0x18] sm:$0xff]
        %v468 = vld [vmem:[%s418 + $0x20] sm:$0xff]
        %v469 = vld [vmem:[%s418 + $0x28] sm:$0xff]
        %v470 = vld [vmem:[%s418 + $0x30] sm:$0xff]
        %v471 = vld [vmem:[%s418 + $0x38] sm:$0xff]
        %v472 = vld [vmem:[%s418 + $0x40] sm:$0xff]
        %v473 = vld [vmem:[%s418 + $0x48] sm:$0xff]
        %v474 = vld [vmem:[%s418 + $0x50] sm:$0xff]
        %v475 = vld [vmem:[%s418 + $0x58] sm:$0xff]
        %v476 = vld [vmem:[%s418 + $0x60] sm:$0xff]
        %v477 = vld [vmem:[%s418 + $0x68] sm:$0xff]
        %v478 = vld [vmem:[%s418 + $0x70] sm:$0xff]
        %v479 = vld [vmem:[%s418 + $0x78] sm:$0xff]
        %v480 = vld [vmem:[%s418 + $0x80] sm:$0xff]
        %v481 = vld [vmem:[%s418 + $0x88] sm:$0xff]
        %v482 = vld [vmem:[%s418 + $0x90] sm:$0xff]
        %v483 = vld [vmem:[%s418 + $0x98] sm:$0xff]
        %v484 = vld [vmem:[%s418 + $0xa0] sm:$0xff]
        %v485 = vld [vmem:[%s418 + $0xa8] sm:$0xff]
        %v486 = vld [vmem:[%s418 + $0xb0] sm:$0xff]
        %v487 = vld [vmem:[%s418 + $0xb8] sm:$0xff]
        %v488 = vld [vmem:[%s418 + $0xc0] sm:$0xff]
        %v489 = vld [vmem:[%s418 + $0xc8] sm:$0xff]
        %v490 = vld [vmem:[%s418 + $0xd0] sm:$0xff]
        %v491 = vld [vmem:[%s418 + $0xd8] sm:$0xff]
        %v492 = vld [vmem:[%s418 + $0xe0] sm:$0xff]
        %v493 = vld [vmem:[%s418 + $0xe8] sm:$0xff]
        %v494 = vld [vmem:[%s418 + $0xf0] sm:$0xff]
        %v495 = vld [vmem:[%s418 + $0xf8] sm:$0xff]
        %v496 = vld [vmem:[%s418 + $0x100] sm:$0xff]
        %v497 = vld [vmem:[%s418 + $0x108] sm:$0xff]
        %v498 = vld [vmem:[%s418 + $0x110] sm:$0xff]
        %v499 = vld [vmem:[%s418 + $0x118] sm:$0xff]
        %v500 = vld [vmem:[%s418 + $0x120] sm:$0xff]
        %v501 = vld [vmem:[%s418 + $0x128] sm:$0xff]
        %v502 = vld [vmem:[%s418 + $0x130] sm:$0xff]
        %v503 = vld [vmem:[%s418 + $0x138] sm:$0xff]
        %v504 = vld [vmem:[%s418 + $0x140] sm:$0xff]
        %v505 = vld [vmem:[%s418 + $0x148] sm:$0xff]
        %v506 = vld [vmem:[%s418 + $0x150] sm:$0xff]
        %v507 = vld [vmem:[%s418 + $0x158] sm:$0xff]
        %v508 = vld [vmem:[%s418 + $0x160] sm:$0xff]
        %v509 = vld [vmem:[%s418 + $0x168] sm:$0xff]
        %v510 = vld [vmem:[%s418 + $0x170] sm:$0xff]
        %v511 = vld [vmem:[%s418 + $0x178] sm:$0xff]
        %v512 = vld [vmem:[%s418 + $0x180] sm:$0xff]
        %v513 = vld [vmem:[%s418 + $0x188] sm:$0xff]
        %v514 = vld [vmem:[%s418 + $0x190] sm:$0xff]
        %v515 = vld [vmem:[%s418 + $0x198] sm:$0xff]
        %v516 = vld [vmem:[%s418 + $0x1a0] sm:$0xff]
        %v517 = vld [vmem:[%s418 + $0x1a8] sm:$0xff]
        %v518 = vld [vmem:[%s418 + $0x1b0] sm:$0xff]
        %v519 = vld [vmem:[%s418 + $0x1b8] sm:$0xff]
        %v520 = vld [vmem:[%s418 + $0x1c0] sm:$0xff]
        %v521 = vld [vmem:[%s418 + $0x1c8] sm:$0xff]
        %v522 = vld [vmem:[%s418 + $0x1d0] sm:$0xff]
        %v523 = vld [vmem:[%s418 + $0x1d8] sm:$0xff]
        %v524 = vld [vmem:[%s418 + $0x1e0] sm:$0xff]
        %v525 = vld [vmem:[%s418 + $0x1e8] sm:$0xff]
        %v526 = vld [vmem:[%s418 + $0x1f0] sm:$0xff]
        %v527 = vld [vmem:[%s418 + $0x1f8] sm:$0xff]
        %v528 = vld [vmem:[%s418 + $0x200] sm:$0xff]
        %v529 = vld [vmem:[%s418 + $0x208] sm:$0xff]
        %v530 = vld [vmem:[%s418 + $0x210] sm:$0xff]
        %v531 = vld [vmem:[%s418 + $0x218] sm:$0xff]
        %v532 = vld [vmem:[%s418 + $0x220] sm:$0xff]
        %v533 = vld [vmem:[%s418 + $0x228] sm:$0xff]
        %v534 = vld [vmem:[%s418 + $0x230] sm:$0xff]
        %v535 = vld [vmem:[%s418 + $0x238] sm:$0xff]
        %v536 = vld [vmem:[%s418 + $0x240] sm:$0xff]
        %v537 = vld [vmem:[%s418 + $0x248] sm:$0xff]
        %v538 = vld [vmem:[%s418 + $0x250] sm:$0xff]
        %v539 = vld [vmem:[%s418 + $0x258] sm:$0xff]
        %v540 = vld [vmem:[%s418 + $0x260] sm:$0xff]
        %v541 = vld [vmem:[%s418 + $0x268] sm:$0xff]
        %v542 = vld [vmem:[%s418 + $0x270] sm:$0xff]
        %v543 = vld [vmem:[%s418 + $0x278] sm:$0xff]
        %v544 = vld [vmem:[%s418 + $0x280] sm:$0xff]
        %v545 = vld [vmem:[%s418 + $0x288] sm:$0xff]
        %v546 = vld [vmem:[%s418 + $0x290] sm:$0xff]
        %v547 = vld [vmem:[%s418 + $0x298] sm:$0xff]
        %v548 = vld [vmem:[%s418 + $0x2a0] sm:$0xff]
        %v549 = vld [vmem:[%s418 + $0x2a8] sm:$0xff]
        %v550 = vld [vmem:[%s418 + $0x2b0] sm:$0xff]
        %v551 = vld [vmem:[%s418 + $0x2b8] sm:$0xff]
        %v552 = vld [vmem:[%s418 + $0x2c0] sm:$0xff]
        %v553 = vld [vmem:[%s418 + $0x2c8] sm:$0xff]
        %v554 = vld [vmem:[%s418 + $0x2d0] sm:$0xff]
        %v555 = vld [vmem:[%s418 + $0x2d8] sm:$0xff]
        %v556 = vld [vmem:[%s418 + $0x2e0] sm:$0xff]
        %v557 = vld [vmem:[%s418 + $0x2e8] sm:$0xff]
        %v558 = vld [vmem:[%s418 + $0x2f0] sm:$0xff]
        %v559 = vld [vmem:[%s418 + $0x2f8] sm:$0xff]
        %v560 = vld [vmem:[%s418 + $0x300] sm:$0xff]
        %v561 = vld [vmem:[%s418 + $0x308] sm:$0xff]
        %v562 = vld [vmem:[%s418 + $0x310] sm:$0xff]
        %v563 = vld [vmem:[%s418 + $0x318] sm:$0xff]
        %v564 = vld [vmem:[%s418 + $0x320] sm:$0xff]
        %v565 = vld [vmem:[%s418 + $0x328] sm:$0xff]
        %v566 = vld [vmem:[%s418 + $0x330] sm:$0xff]
        %v567 = vld [vmem:[%s418 + $0x338] sm:$0xff]
        %v568 = vld [vmem:[%s418 + $0x340] sm:$0xff]
        %v569 = vld [vmem:[%s418 + $0x348] sm:$0xff]
        %v570 = vld [vmem:[%s418 + $0x350] sm:$0xff]
        %v571 = vld [vmem:[%s418 + $0x358] sm:$0xff]
        %v572 = vld [vmem:[%s418 + $0x360] sm:$0xff]
        %v573 = vld [vmem:[%s418 + $0x368] sm:$0xff]
        %v574 = vld [vmem:[%s418 + $0x370] sm:$0xff]
        %v575 = vld [vmem:[%s418 + $0x378] sm:$0xff]
        %v576 = vld [vmem:[%s418 + $0x380] sm:$0xff]
        %v577 = vld [vmem:[%s418 + $0x388] sm:$0xff]
        %v578 = vld [vmem:[%s418 + $0x390] sm:$0xff]
        %v579 = vld [vmem:[%s418 + $0x398] sm:$0xff]
        %v580 = vld [vmem:[%s418 + $0x3a0] sm:$0xff]
        %v581 = vld [vmem:[%s418 + $0x3a8] sm:$0xff]
        %v582 = vld [vmem:[%s418 + $0x3b0] sm:$0xff]
        %v583 = vld [vmem:[%s418 + $0x3b8] sm:$0xff]
        %v584 = vld [vmem:[%s418 + $0x3c0] sm:$0xff]
        %v585 = vld [vmem:[%s418 + $0x3c8] sm:$0xff]
        %v586 = vld [vmem:[%s418 + $0x3d0] sm:$0xff]
        %v587 = vld [vmem:[%s418 + $0x3d8] sm:$0xff]
        %v588 = vld [vmem:[%s418 + $0x3e0] sm:$0xff]
        %v589 = vld [vmem:[%s418 + $0x3e8] sm:$0xff]
        %v590 = vld [vmem:[%s418 + $0x3f0] sm:$0xff]
        %v591 = vld [vmem:[%s418 + $0x3f8] sm:$0xff]
        %592 = vmatpush.msra.mxu0 %v524
        %593 = vmatpush.msra.mxu0 %v520
        %594 = vmatpush.msra.mxu0 %v516
        %595 = vmatpush.msra.mxu0 %v512
        %596 = vmatpush.msra.mxu0 %v508
        %597 = vmatpush.msra.mxu0 %v504
        %598 = vmatpush.msra.mxu0 %v500
        %599 = vmatpush.msra.mxu0 %v496
        %600 = vmatpush.msra.mxu0 %v492
        %601 = vmatpush.msra.mxu0 %v488
        %602 = vmatpush.msra.mxu0 %v484
        %603 = vmatpush.msra.mxu0 %v480
        %604 = vmatpush.msra.mxu0 %v476
        %605 = vmatpush.msra.mxu0 %v472
        %606 = vmatpush.msra.mxu0 %v468
        %607 = vmatpush.msra.mxu0 %v464
        %608 = vmatmul.f32.gmra.mxu0 %v462
        %v609 = vpop.f32.mrf.mxu0
        %v610 = vadd.f32 0.0, %v609
        %611 = vdwg.mxu0
        %612 = vmatpush.msra.mxu0 %v588
        %613 = vmatpush.msra.mxu0 %v584
        %614 = vmatpush.msra.mxu0 %v580
        %615 = vmatpush.msra.mxu0 %v576
        %616 = vmatpush.msra.mxu0 %v572
        %617 = vmatpush.msra.mxu0 %v568
        %618 = vmatpush.msra.mxu0 %v564
        %619 = vmatpush.msra.mxu0 %v560
        %620 = vmatpush.msra.mxu0 %v556
        %621 = vmatpush.msra.mxu0 %v552
        %622 = vmatpush.msra.mxu0 %v548
        %623 = vmatpush.msra.mxu0 %v544
        %624 = vmatpush.msra.mxu0 %v540
        %625 = vmatpush.msra.mxu0 %v536
        %626 = vmatpush.msra.mxu0 %v532
        %627 = vmatpush.msra.mxu0 %v528
        %628 = vmatmul.f32.gmra.mxu0 %v463
        %v629 = vpop.f32.mrf.mxu0
        %v630 = vadd.f32 %v610, %v629
        %631 = vdwg.mxu0
        %632 = vmatpush.msra.mxu0 %v525
        %633 = vmatpush.msra.mxu0 %v521
        %634 = vmatpush.msra.mxu0 %v517
        %635 = vmatpush.msra.mxu0 %v513
        %636 = vmatpush.msra.mxu0 %v509
        %637 = vmatpush.msra.mxu0 %v505
        %638 = vmatpush.msra.mxu0 %v501
        %639 = vmatpush.msra.mxu0 %v497
        %640 = vmatpush.msra.mxu0 %v493
        %641 = vmatpush.msra.mxu0 %v489
        %642 = vmatpush.msra.mxu0 %v485
        %643 = vmatpush.msra.mxu0 %v481
        %644 = vmatpush.msra.mxu0 %v477
        %645 = vmatpush.msra.mxu0 %v473
        %646 = vmatpush.msra.mxu0 %v469
        %647 = vmatpush.msra.mxu0 %v465
        %648 = vmatmul.f32.gmra.mxu0 %v462
        %v649 = vpop.f32.mrf.mxu0
        %v650 = vadd.f32 0.0, %v649
        %651 = vdwg.mxu0
        %652 = vmatpush.msra.mxu0 %v589
        %653 = vmatpush.msra.mxu0 %v585
        %654 = vmatpush.msra.mxu0 %v581
        %655 = vmatpush.msra.mxu0 %v577
        %656 = vmatpush.msra.mxu0 %v573
        %657 = vmatpush.msra.mxu0 %v569
        %658 = vmatpush.msra.mxu0 %v565
        %659 = vmatpush.msra.mxu0 %v561
        %660 = vmatpush.msra.mxu0 %v557
        %661 = vmatpush.msra.mxu0 %v553
        %662 = vmatpush.msra.mxu0 %v549
        %663 = vmatpush.msra.mxu0 %v545
        %664 = vmatpush.msra.mxu0 %v541
        %665 = vmatpush.msra.mxu0 %v537
        %666 = vmatpush.msra.mxu0 %v533
        %667 = vmatpush.msra.mxu0 %v529
        %668 = vmatmul.f32.gmra.mxu0 %v463
        %v669 = vpop.f32.mrf.mxu0
        %v670 = vadd.f32 %v650, %v669
        %671 = vdwg.mxu0
        %672 = vmatpush.msra.mxu0 %v526
        %673 = vmatpush.msra.mxu0 %v522
        %674 = vmatpush.msra.mxu0 %v518
        %675 = vmatpush.msra.mxu0 %v514
        %676 = vmatpush.msra.mxu0 %v510
        %677 = vmatpush.msra.mxu0 %v506
        %678 = vmatpush.msra.mxu0 %v502
        %679 = vmatpush.msra.mxu0 %v498
        %680 = vmatpush.msra.mxu0 %v494
        %681 = vmatpush.msra.mxu0 %v490
        %682 = vmatpush.msra.mxu0 %v486
        %683 = vmatpush.msra.mxu0 %v482
        %684 = vmatpush.msra.mxu0 %v478
        %685 = vmatpush.msra.mxu0 %v474
        %686 = vmatpush.msra.mxu0 %v470
        %687 = vmatpush.msra.mxu0 %v466
        %688 = vmatmul.f32.gmra.mxu0 %v462
        %v689 = vpop.f32.mrf.mxu0
        %v690 = vadd.f32 0.0, %v689
        %691 = vdwg.mxu0
        %692 = vmatpush.msra.mxu0 %v590
        %693 = vmatpush.msra.mxu0 %v586
        %694 = vmatpush.msra.mxu0 %v582
        %695 = vmatpush.msra.mxu0 %v578
        %696 = vmatpush.msra.mxu0 %v574
        %697 = vmatpush.msra.mxu0 %v570
        %698 = vmatpush.msra.mxu0 %v566
        %699 = vmatpush.msra.mxu0 %v562
        %700 = vmatpush.msra.mxu0 %v558
        %701 = vmatpush.msra.mxu0 %v554
        %702 = vmatpush.msra.mxu0 %v550
        %703 = vmatpush.msra.mxu0 %v546
        %704 = vmatpush.msra.mxu0 %v542
        %705 = vmatpush.msra.mxu0 %v538
        %706 = vmatpush.msra.mxu0 %v534
        %707 = vmatpush.msra.mxu0 %v530
        %708 = vmatmul.f32.gmra.mxu0 %v463
        %v709 = vpop.f32.mrf.mxu0
        %v710 = vadd.f32 %v690, %v709
        %711 = vdwg.mxu0
        %712 = vmatpush.msra.mxu0 %v527
        %713 = vmatpush.msra.mxu0 %v523
        %714 = vmatpush.msra.mxu0 %v519
        %715 = vmatpush.msra.mxu0 %v515
        %716 = vmatpush.msra.mxu0 %v511
        %717 = vmatpush.msra.mxu0 %v507
        %718 = vmatpush.msra.mxu0 %v503
        %719 = vmatpush.msra.mxu0 %v499
        %720 = vmatpush.msra.mxu0 %v495
        %721 = vmatpush.msra.mxu0 %v491
        %722 = vmatpush.msra.mxu0 %v487
        %723 = vmatpush.msra.mxu0 %v483
        %724 = vmatpush.msra.mxu0 %v479
        %725 = vmatpush.msra.mxu0 %v475
        %726 = vmatpush.msra.mxu0 %v471
        %727 = vmatpush.msra.mxu0 %v467
        %728 = vmatmul.f32.gmra.mxu0 %v462
        %v729 = vpop.f32.mrf.mxu0
        %v730 = vadd.f32 0.0, %v729
        %731 = vdwg.mxu0
        %732 = vmatpush.msra.mxu0 %v591
        %733 = vmatpush.msra.mxu0 %v587
        %734 = vmatpush.msra.mxu0 %v583
        %735 = vmatpush.msra.mxu0 %v579
        %736 = vmatpush.msra.mxu0 %v575
        %737 = vmatpush.msra.mxu0 %v571
        %738 = vmatpush.msra.mxu0 %v567
        %739 = vmatpush.msra.mxu0 %v563
        %740 = vmatpush.msra.mxu0 %v559
        %741 = vmatpush.msra.mxu0 %v555
        %742 = vmatpush.msra.mxu0 %v551
        %743 = vmatpush.msra.mxu0 %v547
        %744 = vmatpush.msra.mxu0 %v543
        %745 = vmatpush.msra.mxu0 %v539
        %746 = vmatpush.msra.mxu0 %v535
        %747 = vmatpush.msra.mxu0 %v531
        %748 = vmatmul.f32.gmra.mxu0 %v463
        %v749 = vpop.f32.mrf.mxu0
        %v750 = vadd.f32 %v730, %v749
        %751 = vdwg.mxu0
        %v752 = vmax.f32 %v630, 0.0
        %v753 = vmax.f32 %v670, 0.0
        %v754 = vmax.f32 %v710, 0.0
        %v755 = vmax.f32 %v750, 0.0
        %756 = vst [vmem:[%s460] sm:$0xff] %v752
        %757 = vst [vmem:[%s460 + $0x8] sm:$0xff] %v753
        %758 = vst [vmem:[%s460 + $0x10] sm:$0xff] %v754
        %759 = vst [vmem:[%s460 + $0x18] sm:$0xff] %v755
        %s760 = smul.u32 4, %s18
        %p761 = scmp.lt.s32.totalorder %s17, 0
        %s762 = scalar_select %p761, %s17, 0
        %p763 = scmp.lt.s32.totalorder %s760, 7
        %s764 = scalar_select %p763, %s760, 7
        %s765 = smul.addr %s762, 8
        %s766 = sadd.s32 %s764, %s765
        %s767 = smul.addr %s766, 8
        %s768 = scalar_lea.vmem %s2, %s767
        // Predicated region
        $region52: #{bilinear_module.1} parent=46 // pred_check
          %p769 = pneg %p97
        $region53: #{bilinear_module.1} parent=46 // pred_check_branch
          %771 = sbr.rel (%p769) target = $region55
        $region54: #{bilinear_module.1} parent=46 // pred_region
          %s772 = smul.u32 4, %s18
        $region55: #{bilinear_module.1} parent=46 // pred_fallthru
          _
      $region47: #{bilinear_module.1} parent=5 // pred_fallthru
        _
      %p773 = scmp.le.s32.totalorder 2, %s8
      // Predicated region
      $region56: #{bilinear_module.1} parent=5 // pred_check
        %p774 = pneg %p773
      $region57: #{bilinear_module.1} parent=5 // pred_check_branch
        %776 = sbr.rel (%p774) target = $region59
      $region58: #{bilinear_module.1} parent=5 // pred_region
        %s777 = ssub.s32 %s8, 2
        // Predicated region
        $region60: #{bilinear_module.1} parent=58 // pred_check
          %p778 = pneg %p103
        $region61: #{bilinear_module.1} parent=58 // pred_check_branch
          %780 = sbr.rel (%p778) target = $region63
        $region62: #{bilinear_module.1} parent=58 // pred_region
          %s781 = smul.u32 4, %s20
          %p782 = scmp.lt.s32.totalorder %s19, 0
          %s783 = scalar_select %p782, %s19, 0
          %p784 = scmp.lt.s32.totalorder %s781, 7
          %s785 = scalar_select %p784, %s781, 7
          %s786 = smul.addr %s783, 8
          %s787 = sadd.s32 %s785, %s786
          %s788 = smul.addr %s787, 8
          %s789 = scalar_lea.vmem %s2, %s788
        $region63: #{bilinear_module.1} parent=58 // pred_fallthru
          _
      $region59: #{bilinear_module.1} parent=5 // pred_fallthru
        _
    $region6: #{bilinear_module.1} parent=1 // loop_footer
      %s12 = sadd.s32 1, %s8
    $region7: #{bilinear_module.1} parent=1 // loop_footer_branch
      %7 = sbr.rel target = $region3
    $region8: #{bilinear_module.1} parent=1 // loop_exit
      _

</llo_original>
